<compile_context>
chip_gen: v5e
topology: v5e:2x2
jax: 0.10.0
libtpu: 0.0.40
codegen_flags: <defaults>
</compile_context>

<pallas_src>
import functools

import jax
import jax.numpy as jnp
from jax.experimental import pallas as pl
from jax.experimental.pallas import tpu as pltpu


def _round_up(x, m):
    return ((x + m - 1) // m) * m


def _basis_loss_kernel(q_ref, w_ref, out_ref, acc_ref, *, alpha):
    """One (layer, k-chunk) grid step.

    q_ref  : (L,) int32 SMEM      -- true basis count Q of each layer.
    w_ref  : (1, QP, TK) f32 VMEM -- k-th D-chunk of layer l (zero padded).
    out_ref: (1, 8, 128) f32 VMEM -- lane-dense per-layer loss (broadcast).
    acc_ref: (QP, QP) f32 VMEM    -- Gram accumulator across k chunks.
    """
    l = pl.program_id(0)
    k = pl.program_id(1)
    nk = pl.num_programs(1)

    @pl.when(k == 0)
    def _():
        acc_ref[...] = jnp.zeros_like(acc_ref)

    Wc = w_ref[0]  # (QP, TK)
    # Gram update on the MXU: contract the last dim of both operands, so no
    # transposed copy of the weight tile is ever materialized.
    acc_ref[...] += jax.lax.dot_general(
        Wc, Wc,
        dimension_numbers=(((1,), (1,)), ((), ())),
        preferred_element_type=jnp.float32)

    @pl.when(k == nk - 1)
    def _():
        q = q_ref[l]                      # runtime Q for this layer
        G = acc_ref[...]                  # (QP, QP)
        QP = G.shape[0]

        ri = jax.lax.broadcasted_iota(jnp.int32, (QP, QP), 0)
        ci = jax.lax.broadcasted_iota(jnp.int32, (QP, QP), 1)
        diag = ri == ci
        valid = (ri < q) & (ci < q)

        # Squared row norms come straight off the Gram diagonal (already
        # computed by the MXU).  rsqrt runs on the EUP; eps matches
        # F.normalize's max(norm, 1e-12)  (sqrt(1e-24) == 1e-12).
        diag_only = jnp.where(diag, G, 0.0)
        inv_col = jax.lax.rsqrt(jnp.maximum(
            jnp.sum(diag_only, axis=1, keepdims=True), 1e-24))   # (QP, 1)
        inv_row = jax.lax.rsqrt(jnp.maximum(
            jnp.sum(diag_only, axis=0, keepdims=True), 1e-24))   # (1, QP)

        Gn = jnp.abs(G) * (inv_col * inv_row)
        G2 = jnp.where(valid, Gn * Gn, 0.0)

        diag_sum = jnp.sum(jnp.where(diag, G2, 0.0))
        total_sum = jnp.sum(G2)

        qf = q.astype(jnp.float32)
        dp_diag = qf - diag_sum                    # sum_i (1 - Gn_ii^2)
        dp_else = 0.5 * (total_sum - diag_sum)     # strict upper triangle (symmetry)
        loss = (alpha * dp_diag / qf
                + 2.0 * (1.0 - alpha) / (qf * (qf - 1.0)) * dp_else)
        out_ref[...] = jnp.broadcast_to(loss, out_ref.shape)


def basis_l2_loss(basis_weights, alpha=0.5):
    """Mirrors basisL2Loss.forward over a list of basisConv2d basis_weight tensors."""
    mats, qs = [], []
    for w in basis_weights:
        Q = int(w.shape[0])
        if Q == 1:                     # skipped, exactly as in the PyTorch forward
            continue
        mats.append(jnp.reshape(w, (Q, -1)).astype(jnp.float32))
        qs.append(Q)
    if not mats:
        return jnp.float32(0.0)

    L = len(mats)
    QP = max(8, _round_up(max(m.shape[0] for m in mats), 8))
    D128 = max(128, _round_up(max(m.shape[1] for m in mats), 128))

    # Chunk the contraction axis so the double-buffered (QP, TK) input slab
    # stays around <= 8 MiB (safe for v5e's 16 MiB scoped VMEM default and
    # v7x's 64 MiB physical VMEM).
    lane_budget = (8 * 1024 * 1024) // (2 * QP * 4)
    TK = min(D128, max(128, (lane_budget // 128) * 128))
    DP = _round_up(D128, TK)
    nk = DP // TK

    # Single padded, stacked slab (padding rows/cols are exact zeros).
    stacked = jnp.stack(
        [jnp.pad(m, ((0, QP - m.shape[0]), (0, DP - m.shape[1]))) for m in mats])
    q_arr = jnp.asarray(qs, dtype=jnp.int32)

    kernel = functools.partial(_basis_loss_kernel, alpha=float(alpha))
    per_layer = pl.pallas_call(
        kernel,
        out_shape=jax.ShapeDtypeStruct((L, 8, 128), jnp.float32),
        grid_spec=pltpu.PrefetchScalarGridSpec(
            num_scalar_prefetch=1,
            grid=(L, nk),
            in_specs=[pl.BlockSpec((1, QP, TK), lambda l, k, q_ref: (l, 0, k))],
            out_specs=pl.BlockSpec((1, 8, 128), lambda l, k, q_ref: (l, 0, 0)),
            scratch_shapes=[pltpu.VMEM((QP, QP), jnp.float32)],
        ),
        compiler_params=pltpu.CompilerParams(
            dimension_semantics=("parallel", "arbitrary"),
            vmem_limit_bytes=32 * 1024 * 1024,
        ),
    )(q_arr, stacked)
    return jnp.sum(per_layer[:, 0, 0])


def _reference_loss(basis_weights, alpha=0.5):
    """Pure-JAX reference replicating the PyTorch forward."""
    loss_m = jnp.float32(0.0)
    for w in basis_weights:
        Q = int(w.shape[0])
        if Q == 1:
            continue
        Wt = jnp.reshape(w, (Q, -1)).astype(jnp.float32).T        # (D, Q)
        nrm = jnp.maximum(jnp.linalg.norm(Wt, axis=0, keepdims=True), 1e-12)
        Wn = Wt / nrm
        G = jnp.abs(Wn.T @ Wn)
        dp_diag = jnp.sum(1.0 - jnp.diag(G) ** 2)
        dp_else = jnp.sum(jnp.triu(G, 1) ** 2)
        loss_m = loss_m + (alpha * dp_diag / Q
                           + 2.0 * (1.0 - alpha) / (Q * (Q - 1)) * dp_else)
    return loss_m


if __name__ == "__main__":
    key = jax.random.PRNGKey(0)
    k1, k2, k3 = jax.random.split(key, 3)

    # Synthetic "basis_model": three basisConv2d-style basis_weight tensors
    # (Q, C, kh, kw).  The Q == 1 layer must be skipped, as in the PyTorch code.
    basis_weights = [
        jax.random.normal(k1, (8, 4, 3, 3), dtype=jnp.float32),
        jax.random.normal(k2, (6, 8, 3, 3), dtype=jnp.float32),
        jax.random.normal(k3, (1, 4, 3, 3), dtype=jnp.float32),  # skipped (Q == 1)
    ]
    alpha = 0.5

    loss = jax.block_until_ready(basis_l2_loss(basis_weights, alpha))
    ref = jax.block_until_ready(_reference_loss(basis_weights, alpha))
    assert jnp.allclose(loss, ref, rtol=1e-4, atol=1e-5), (loss, ref)

    print("KERNEL_OK")
</pallas_src>

<mosaic_0001>
module attributes {stable_mosaic.version = 11 : i64} {
  func.func @_basis_loss_kernel(%arg0: i32, %arg1: i32, %arg2: memref<2xi32, #tpu.memory_space<smem>>, %arg3: memref<1x8x128xf32, #tpu.memory_space<vmem>>, %arg4: memref<1x8x128xf32, #tpu.memory_space<vmem>>, %arg5: memref<8x8xf32, #tpu.memory_space<vmem>>) attributes {dimension_semantics = [#tpu.dimension_semantics<parallel>, #tpu.dimension_semantics<arbitrary>], iteration_bounds = array<i64: 2, 1>, scalar_prefetch = 1 : i64, scratch_operands = 1 : i64, tpu.core_type = #tpu.core_type<tc>, window_params = [{transform_indices = @transform_0, window_bounds = array<i64: 1, 8, 128>}, {transform_indices = @transform_1, window_bounds = array<i64: 1, 8, 128>}]} {
    %c0_i32 = arith.constant 0 : i32
    %0 = arith.cmpi eq, %arg1, %c0_i32 : i32
    %1 = arith.extui %0 : i1 to i32
    %c0_i32_0 = arith.constant 0 : i32
    %2 = arith.cmpi ne, %1, %c0_i32_0 : i32
    scf.if %2 {
      %cst_9 = arith.constant 0.000000e+00 : f32
      %12 = vector.broadcast %cst_9 : f32 to vector<8x8xf32>
      %c0_10 = arith.constant 0 : index
      %c0_11 = arith.constant 0 : index
      %13 = vector.load %arg5[%c0_10, %c0_11] : memref<8x8xf32, #tpu.memory_space<vmem>>, vector<8x8xf32>
      tpu.vector_store %arg5[%c0_10, %c0_11], %12 {strides = array<i32>} : memref<8x8xf32, #tpu.memory_space<vmem>>, vector<8x8xf32>,
    } else {
    }
    %c0 = arith.constant 0 : index
    %c0_1 = arith.constant 0 : index
    %c0_2 = arith.constant 0 : index
    %3 = vector.load %arg3[%c0, %c0_1, %c0_2] : memref<1x8x128xf32, #tpu.memory_space<vmem>>, vector<1x8x128xf32>
    %4 = vector.shape_cast %3 : vector<1x8x128xf32> to vector<8x128xf32>
    %c0_3 = arith.constant 0 : index
    %c0_4 = arith.constant 0 : index
    %5 = vector.load %arg5[%c0_3, %c0_4] : memref<8x8xf32, #tpu.memory_space<vmem>>, vector<8x8xf32>
    %cst = arith.constant dense<0.000000e+00> : vector<8x8xf32>
    %6 = tpu.matmul %4, %4, %cst {dimension_numbers = #tpu.dot_dimension_numbers<[1], [1], [0], [0], [0, 0, 1, 0], [], []>} : vector<8x128xf32>, vector<8x128xf32>, vector<8x8xf32> -> vector<8x8xf32>
    %7 = arith.addf %5, %6 : vector<8x8xf32>
    %c0_5 = arith.constant 0 : index
    %c0_6 = arith.constant 0 : index
    %8 = vector.load %arg5[%c0_5, %c0_6] : memref<8x8xf32, #tpu.memory_space<vmem>>, vector<8x8xf32>
    tpu.vector_store %arg5[%c0_5, %c0_6], %7 {strides = array<i32>} : memref<8x8xf32, #tpu.memory_space<vmem>>, vector<8x8xf32>,
    %c0_i32_7 = arith.constant 0 : i32
    %9 = arith.cmpi eq, %arg1, %c0_i32_7 : i32
    %10 = arith.extui %9 : i1 to i32
    %c0_i32_8 = arith.constant 0 : i32
    %11 = arith.cmpi ne, %10, %c0_i32_8 : i32
    scf.if %11 {
      %12 = arith.index_cast %arg0 : i32 to index
      %13 = memref.load %arg2[%12] : memref<2xi32, #tpu.memory_space<smem>>
      %c0_9 = arith.constant 0 : index
      %c0_10 = arith.constant 0 : index
      %14 = vector.load %arg5[%c0_9, %c0_10] : memref<8x8xf32, #tpu.memory_space<vmem>>, vector<8x8xf32>
      %15 = tpu.iota {dimensions = array<i32: 0>} : vector<8x8xi32>
      %16 = tpu.iota {dimensions = array<i32: 1>} : vector<8x8xi32>
      %17 = arith.cmpi eq, %15, %16 : vector<8x8xi32>
      %18 = vector.broadcast %13 : i32 to vector<8x8xi32>
      %19 = arith.cmpi slt, %15, %18 : vector<8x8xi32>
      %20 = vector.broadcast %13 : i32 to vector<8x8xi32>
      %21 = arith.cmpi slt, %16, %20 : vector<8x8xi32>
      %22 = arith.andi %19, %21 : vector<8x8xi1>
      %cst_11 = arith.constant 0.000000e+00 : f32
      %23 = vector.broadcast %cst_11 : f32 to vector<8x8xf32>
      %24 = arith.select %17, %14, %23 : vector<8x8xi1>, vector<8x8xf32>
      %cst_12 = arith.constant dense<0.000000e+00> : vector<8xf32>
      %25 = vector.multi_reduction <add>, %24, %cst_12 [1] : vector<8x8xf32> to vector<8xf32>
      %26 = vector.shape_cast %25 : vector<8xf32> to vector<8x1xf32>
      %cst_13 = arith.constant 1.000000e-24 : f32
      %27 = vector.broadcast %cst_13 : f32 to vector<8x1xf32>
      %28 = arith.maximumf %26, %27 : vector<8x1xf32>
      %29 = math.rsqrt %28 : vector<8x1xf32>
      %cst_14 = arith.constant dense<0.000000e+00> : vector<8xf32>
      %30 = vector.multi_reduction <add>, %24, %cst_14 [0] : vector<8x8xf32> to vector<8xf32>
      %31 = vector.shape_cast %30 : vector<8xf32> to vector<1x8xf32>
      %cst_15 = arith.constant 1.000000e-24 : f32
      %32 = vector.broadcast %cst_15 : f32 to vector<1x8xf32>
      %33 = arith.maximumf %31, %32 : vector<1x8xf32>
      %34 = math.rsqrt %33 : vector<1x8xf32>
      %35 = math.absf %14 : vector<8x8xf32>
      %36 = vector.broadcast %29 : vector<8x1xf32> to vector<8x8xf32>
      %37 = vector.broadcast %34 : vector<1x8xf32> to vector<8x8xf32>
      %38 = arith.mulf %36, %37 : vector<8x8xf32>
      %39 = arith.mulf %35, %38 : vector<8x8xf32>
      %40 = arith.mulf %39, %39 : vector<8x8xf32>
      %cst_16 = arith.constant 0.000000e+00 : f32
      %41 = vector.broadcast %cst_16 : f32 to vector<8x8xf32>
      %42 = arith.select %22, %40, %41 : vector<8x8xi1>, vector<8x8xf32>
      %cst_17 = arith.constant 0.000000e+00 : f32
      %43 = vector.broadcast %cst_17 : f32 to vector<8x8xf32>
      %44 = arith.select %17, %42, %43 : vector<8x8xi1>, vector<8x8xf32>
      %45 = vector.shape_cast %44 : vector<8x8xf32> to vector<1x8x8xf32>
      %cst_18 = arith.constant dense<0.000000e+00> : vector<1xf32>
      %46 = vector.multi_reduction <add>, %45, %cst_18 [1, 2] : vector<1x8x8xf32> to vector<1xf32>
      %47 = vector.shape_cast %46 : vector<1xf32> to vector<1x1x1xf32>
      %48 = vector.extract %47[0, 0, 0] : f32 from vector<1x1x1xf32>
      %49 = vector.shape_cast %42 : vector<8x8xf32> to vector<1x8x8xf32>
      %cst_19 = arith.constant dense<0.000000e+00> : vector<1xf32>
      %50 = vector.multi_reduction <add>, %49, %cst_19 [1, 2] : vector<1x8x8xf32> to vector<1xf32>
      %51 = vector.shape_cast %50 : vector<1xf32> to vector<1x1x1xf32>
      %52 = vector.extract %51[0, 0, 0] : f32 from vector<1x1x1xf32>
      %53 = arith.sitofp %13 : i32 to f32
      %54 = arith.subf %53, %48 : f32
      %55 = arith.subf %52, %48 : f32
      %cst_20 = arith.constant 5.000000e-01 : f32
      %56 = arith.mulf %cst_20, %55 : f32
      %cst_21 = arith.constant 5.000000e-01 : f32
      %57 = arith.mulf %cst_21, %54 : f32
      %58 = arith.divf %57, %53 : f32
      %cst_22 = arith.constant 1.000000e+00 : f32
      %59 = arith.subf %53, %cst_22 : f32
      %60 = arith.mulf %53, %59 : f32
      %cst_23 = arith.constant 1.000000e+00 : f32
      %61 = arith.divf %cst_23, %60 : f32
      %62 = arith.mulf %61, %56 : f32
      %63 = arith.addf %58, %62 : f32
      %64 = vector.broadcast %63 : f32 to vector<1x8x128xf32>
      %c0_24 = arith.constant 0 : index
      %c0_25 = arith.constant 0 : index
      %c0_26 = arith.constant 0 : index
      %65 = vector.load %arg4[%c0_24, %c0_25, %c0_26] : memref<1x8x128xf32, #tpu.memory_space<vmem>>, vector<1x8x128xf32>
      tpu.vector_store %arg4[%c0_24, %c0_25, %c0_26], %64 {strides = array<i32>} : memref<1x8x128xf32, #tpu.memory_space<vmem>>, vector<1x8x128xf32>,
    } else {
    }
    return
  }
  func.func @transform_0(%arg0: i32, %arg1: i32, %arg2: memref<2xi32, #tpu.memory_space<smem>>) -> (i32, i32, i32) {
    %c0_i32 = arith.constant 0 : i32
    %c0_i32_0 = arith.constant 0 : i32
    return %arg0, %c0_i32, %arg1 : i32, i32, i32
  }
  func.func @transform_1(%arg0: i32, %arg1: i32, %arg2: memref<2xi32, #tpu.memory_space<smem>>) -> (i32, i32, i32) {
    %c0_i32 = arith.constant 0 : i32
    %c0_i32_0 = arith.constant 0 : i32
    %c0_i32_1 = arith.constant 0 : i32
    return %arg0, %c0_i32, %c0_i32_0 : i32, i32, i32
  }
}

</mosaic_0001>

<llo_original>
// kernel: tpu_custom_call.1
$region0: #{tpu_custom_call.1}
  #allocation0 [shape = 'u32[]', space=smem, size = 0x4, offset = 0x4, fixed_abs, tag = 'smem constant byte address 0x4 - core index']
  #allocation1 [shape = 'u32[72,128]{1,0:T(1,128)}', space=vmem, size = 0x9000, scoped, tag = 'internal scratch']
  #allocation2 [shape = 'f32[8,8]{1,0:T(8,128)}', space=vmem, size = 0x1000, scoped, tag = 'scratch operand']
  #allocation3 [shape = 's32[1]{0}', space=sflag, size = 0x4, scoped, tag = 'scoped memory for tpu_custom_call.1']
  #allocation4 [shape = 'u8[512]{0}', space=smem, size = 0x200, scoped, tag = 'prefetched SMEM operand 0']
  %s0 = inlined_call_operand.hbm [shape: s32[2], index: 0, kind: input, shape index: {}]
  %s1 = inlined_call_operand.hbm [shape: f32[2,8,128], index: 1, kind: input, shape index: {}]
  %s2 = inlined_call_operand.hbm [shape: f32[2,8,128], index: 2, kind: output, shape index: {}]
  %s3 = sld [smem:[#allocation0]]
  $region49: #{tpu_custom_call.1} parent=0
    _
  %s5 = ssub.s32 1, %s3
  %s6 = scalar_select 0, %s5, %s3
  %s8 = sshll.u32 %s0, 4
  %s9 = int_to_ptr.hbm [resolvable:$true] %s8
  %11 = dma.hbm_to_smem %s9, 16, [#allocation4], [#allocation3]
  %13 = dma.done [#allocation3], 16
  %14 = sfence
  $region1: #{tpu_custom_call.1} parent=0
    #allocation5 [shape = 'u8[8192]{0}', space=vmem, size = 0x2000, scoped, tag = 'input window, operand 1']
    #allocation6 [shape = 's32[2]{0}', space=sflag, size = 0x8, scoped, tag = 'scoped memory for tpu_custom_call.1']
    #allocation7 [shape = 's32[2]{0}', space=sflag, size = 0x8, scoped, tag = 'scoped memory for tpu_custom_call.1']
    #allocation8 [shape = 'u8[8192]{0}', space=vmem, size = 0x2000, scoped, tag = 'output window, operand 0']
    %15 = vsyncpa [#allocation6], 0
    %s16 = scalar_lea.sflag [#allocation6], 1
    %17 = vsyncpa %s16, 0
    %18 = vsyncpa [#allocation7], 0
    %s19 = scalar_lea.sflag [#allocation7], 1
    %20 = vsyncpa %s19, 0
    loop: start=0, step=1, limit=4
    $region2: #{tpu_custom_call.1} parent=1 // loop_pre_header
      _
    $region3: #{tpu_custom_call.1} parent=1 // loop_header
      %s22 = sphi 0, %s26
      %p23 = scmp.ge.s32.totalorder %s22, 4
      %s29 = sphi 0, %s41
      %s30 = sphi 0, %s37
      %s31 = sphi 0, %s29
      %s32 = sphi 0, %s30
      %s33 = sphi 0, %s31
      %s34 = sphi 0, %s32
      %s46 = sphi 0, %s48
      %s49 = sphi 0, %s46
      %s50 = sphi 0, %s49
      %s66 = sphi 0, %s50
      %s72 = sphi 0, %s74
      %s75 = sphi 0, %s72
      %s76 = sphi 0, %s75
      %s92 = sphi 0, %s76
    $region4: #{tpu_custom_call.1} parent=1 // loop_header_branch
      %25 = sbr.rel (%p23) target = $region8
    $region5: #{tpu_custom_call.1} parent=1 // loop_body
      %s27 = ssub.s32 %s22, 1
      %s28 = ssub.s32 %s22, 2
      %s35 = sadd.s32 1, %s30
      %p36 = scmp.ge.s32.totalorder %s35, 1
      %s37 = scalar_select %p36, 0, %s35
      %s38 = sadd.s32 1, %s29
      %s39 = scalar_select %p36, %s38, %s29
      %p40 = scmp.ge.s32.totalorder %s39, 2
      %s41 = scalar_select %p40, 0, %s39
      %s42 = ssub.s32 %s29, %s41
      %s43 = ssub.s32 %s30, %s37
      %s44 = sor.u32 %s42, %s43
      %p45 = scmp.eq.s32.totalorder %s44, 0
      %s47 = sadd.s32 %s46, 1
      %s48 = scalar_select %p45, %s46, %s47
      %p51 = pneg %p45
      %p52 = scmp.eq.s32.totalorder %s22, 1
      %p53 = por %p51, %p52
      %p54 = scmp.ne.s32.totalorder %s46, %s49
      %p55 = scmp.eq.s32.totalorder %s22, 0
      %p56 = por %p54, %p55
      %p57 = scmp.ne.s32.totalorder %s46, %s49
      %p58 = scmp.eq.s32.totalorder %s27, 1
      %p59 = por %p57, %p58
      %p60 = scmp.ne.s32.totalorder %s49, %s50
      %p61 = scmp.eq.s32.totalorder %s27, 0
      %p62 = por %p60, %p61
      %p63 = scmp.ne.s32.totalorder %s49, %s50
      %p64 = scmp.eq.s32.totalorder %s28, 1
      %p65 = por %p63, %p64
      %p67 = scmp.ne.s32.totalorder %s50, %s66
      %p68 = scmp.eq.s32.totalorder %s28, 0
      %p69 = por %p67, %p68
      %s70 = ssub.s32 %s29, %s41
      %p71 = scmp.eq.s32.totalorder %s70, 0
      %s73 = sadd.s32 %s72, 1
      %s74 = scalar_select %p71, %s72, %s73
      %p77 = pneg %p71
      %p78 = scmp.eq.s32.totalorder %s22, 1
      %p79 = por %p77, %p78
      %p80 = scmp.ne.s32.totalorder %s72, %s75
      %p81 = scmp.eq.s32.totalorder %s22, 0
      %p82 = por %p80, %p81
      %p83 = scmp.ne.s32.totalorder %s72, %s75
      %p84 = scmp.eq.s32.totalorder %s27, 1
      %p85 = por %p83, %p84
      %p86 = scmp.ne.s32.totalorder %s75, %s76
      %p87 = scmp.eq.s32.totalorder %s27, 0
      %p88 = por %p86, %p87
      %p89 = scmp.ne.s32.totalorder %s75, %s76
      %p90 = scmp.eq.s32.totalorder %s28, 1
      %p91 = por %p89, %p90
      %p93 = scmp.ne.s32.totalorder %s76, %s92
      %p94 = scmp.eq.s32.totalorder %s28, 0
      %p95 = por %p93, %p94
      %p96 = scmp.le.s32.totalorder 1, %s22
      %p97 = scmp.lt.s32.totalorder %s22, 3
      %p98 = pnand %p96, %p97
      %p99 = pneg %p98
      // Predicated region
      $region9: #{tpu_custom_call.1} parent=5 // pred_check
        _
      $region10: #{tpu_custom_call.1} parent=5 // pred_check_branch
        %101 = sbr.rel (%p98) target = $region12
      $region11: #{tpu_custom_call.1} parent=5 // pred_region
        %s102 = ssub.s32 %s22, 1
      $region12: #{tpu_custom_call.1} parent=5 // pred_fallthru
        _
      %p103 = scmp.lt.s32.totalorder %s22, 2
      // Predicated region
      $region13: #{tpu_custom_call.1} parent=5 // pred_check
        %p104 = pneg %p103
      $region14: #{tpu_custom_call.1} parent=5 // pred_check_branch
        %106 = sbr.rel (%p104) target = $region16
      $region15: #{tpu_custom_call.1} parent=5 // pred_region
        // Predicated region
        $region17: #{tpu_custom_call.1} parent=15 // pred_check
          %p107 = pneg %p56
        $region18: #{tpu_custom_call.1} parent=15 // pred_check_branch
          %109 = sbr.rel (%p107) target = $region20
        $region19: #{tpu_custom_call.1} parent=15 // pred_region
          %s110 = sand.u32 %s46, 1
          %s111 = scalar_lea.sflag [#allocation6], %s110
          %s112 = sand.u32 %s46, 1
          %s113 = smul.addr %s112, 8
          %s114 = scalar_lea.vmem [#allocation5], %s113
          %116 = vsyncadd %s111, 0
          %s117 = sadd.s32 %s30, %s29
          %s118 = smul.addr %s117, 8
          %s119 = scalar_lea.hbm %s1, %s118
          %s121 = sshll.u32 %s119, 4
          %s122 = int_to_ptr.hbm [resolvable:$true] %s121
          %s123 = sshll.u32 %s114, 4
          %s124 = int_to_ptr.vmem [resolvable:$true] %s123
          %126 = dma.hbm_to_vmem [thread:$0]  %s122, 128, %s124, %s111
        $region20: #{tpu_custom_call.1} parent=15 // pred_fallthru
          _
      $region16: #{tpu_custom_call.1} parent=5 // pred_fallthru
        _
      %p127 = scmp.le.s32.totalorder 1, %s22
      %p128 = scmp.lt.s32.totalorder %s22, 3
      %p129 = pnand %p127, %p128
      %p130 = pneg %p129
      // Predicated region
      $region21: #{tpu_custom_call.1} parent=5 // pred_check
        _
      $region22: #{tpu_custom_call.1} parent=5 // pred_check_branch
        %132 = sbr.rel (%p129) target = $region24
      $region23: #{tpu_custom_call.1} parent=5 // pred_region
        %s133 = ssub.s32 %s22, 1
        %s134 = sand.u32 %s49, 1
        %s135 = scalar_lea.sflag [#allocation6], %s134
        %s136 = sand.u32 %s49, 1
        %s137 = smul.addr %s136, 8
        %s138 = scalar_lea.vmem [#allocation5], %s137
        // Predicated region
        $region25: #{tpu_custom_call.1} parent=23 // pred_check
          %p139 = pneg %p62
        $region26: #{tpu_custom_call.1} parent=23 // pred_check_branch
          %141 = sbr.rel (%p139) target = $region28
        $region27: #{tpu_custom_call.1} parent=23 // pred_region
          %143 = dma.done %s135, 128
        $region28: #{tpu_custom_call.1} parent=23 // pred_fallthru
          _
        %s144 = sand.u32 %s49, 1
        %s145 = scalar_lea.sflag [#allocation6], %s144
        %s146 = sand.u32 %s49, 1
        %s147 = smul.addr %s146, 8
        %s148 = scalar_lea.vmem [#allocation5], %s147
        %p149 = pneg %p62
        %p150 = pneg %p59
        %p151 = pneg %p88
        %p152 = pneg %p85
        %s153 = sand.u32 %s75, 1
        %s154 = scalar_lea.sflag [#allocation7], %s153
        %s155 = sand.u32 %s75, 1
        %s156 = smul.addr %s155, 8
        %s157 = scalar_lea.vmem [#allocation8], %s156
        %p158 = scmp.eq.s32.totalorder %s32, 0
        // Predicated region
        $region29: #{tpu_custom_call.1} parent=23 // pred_check
          %p159 = pneg %p158
        $region30: #{tpu_custom_call.1} parent=23 // pred_check_branch
          %161 = sbr.rel (%p159) target = $region32
        $region31: #{tpu_custom_call.1} parent=23 // pred_region
          %vm162 = vcmask 64512
          %163 = vst.msk [vmem:[#allocation2] sm:$0xff] %vm162, 0.0
        $region32: #{tpu_custom_call.1} parent=23 // pred_fallthru
          _
        %v164 = vld [vmem:[%s138] sm:$0xff]
        %v165 = vld [vmem:[#allocation2] sm:$0xff]
        %166 = vmatpush.xpose.msra.mxu0 0.0
        %167 = vmatpush.xpose.msra.mxu0 0.0
        %168 = vmatpush.xpose.msra.mxu0 0.0
        %169 = vmatpush.xpose.msra.mxu0 0.0
        %170 = vmatpush.xpose.msra.mxu0 0.0
        %171 = vmatpush.xpose.msra.mxu0 0.0
        %172 = vmatpush.xpose.msra.mxu0 0.0
        %173 = vmatpush.xpose.msra.mxu0 0.0
        %174 = vmatpush.xpose.msra.mxu0 0.0
        %175 = vmatpush.xpose.msra.mxu0 0.0
        %176 = vmatpush.xpose.msra.mxu0 0.0
        %177 = vmatpush.xpose.msra.mxu0 0.0
        %178 = vmatpush.xpose.msra.mxu0 0.0
        %179 = vmatpush.xpose.msra.mxu0 0.0
        %180 = vmatpush.xpose.msra.mxu0 0.0
        %181 = vmatpush.xpose.msra.mxu0 %v164
        %182 = vmatmul.f32.gmra.mxu0 %v164
        %v183 = vpop.f32.mrf.mxu0
        %v184 = vadd.f32 0.0, %v183
        %185 = vdwg.mxu0
        %v186 = vadd.f32 %v165, %v184
        %vm187 = vcmask 64512
        %188 = vst.msk [vmem:[#allocation2] sm:$0xff] %vm187, %v186
        // Predicated region
        $region33: #{tpu_custom_call.1} parent=23 // pred_check
          %p189 = pneg %p158
        $region34: #{tpu_custom_call.1} parent=23 // pred_check_branch
          %191 = sbr.rel (%p189) target = $region36
        $region35: #{tpu_custom_call.1} parent=23 // pred_region
          %s192 = sld [smem:[#allocation4 + %s31]]
          %v193 = vld [vmem:[#allocation2] sm:$0xff]
          %v194 = vlaneseq
          %v195 = vshrl.u32 %v194, 7
          %v196 = vlaneseq
          %v197 = vand.u32 %v196, 127
          %vm198 = vcmp.eq.s32.totalorder %v195, %v197
          %v199 = vstv %s192
          %vm200 = vcmp.lt.s32.totalorder %v195, %v199
          %vm201 = vcmp.lt.s32.totalorder %v197, %v199
          %vm202 = vmand %vm200, %vm201
          %v203 = vsel %vm198, %v193, 0.0
          %v204 = vsel %vm187, %v203, 0.0
          %205 = vadd.xlane.f32.xlu0 %v204
          %v206 = vpop.xlane.xlu0 %205
          %v207 = vmax.f32 %v206, 1e-24
          %v208 = vrsqrt.pop %v207
          %v209 = vmul.f32 %v208, %v207
          %v210 = vmul.f32 %v209, %v208
          %v211 = vmul.f32 0.5, %v210
          %v212 = vsub.f32 1.5, %v211
          %v213 = vmul.f32 %v208, %v212
          %vm214 = vweird.f32 %v207
          %vm215 = vweird.f32 %v208
          %vm216 = vmor %vm214, %vm215
          %v217 = vsel %vm216, %v208, %v213
          %v218 = vrot.slane %v204, 4
          %v219 = vadd.f32 %v204, %v218
          %v220 = vrot.slane %v219, 2
          %v221 = vadd.f32 %v219, %v220
          %v222 = vrot.slane %v221, 1
          %v223 = vadd.f32 %v221, %v222
          %v224 = vmax.f32 %v223, 1e-24
          %v225 = vrsqrt.pop %v224
          %v226 = vmul.f32 %v225, %v224
          %v227 = vmul.f32 %v226, %v225
          %v228 = vmul.f32 0.5, %v227
          %v229 = vsub.f32 1.5, %v228
          %v230 = vmul.f32 %v225, %v229
          %vm231 = vweird.f32 %v224
          %vm232 = vweird.f32 %v225
          %vm233 = vmor %vm231, %vm232
          %v234 = vsel %vm233, %v225, %v230
          %v235 = vand.u32 2147483647, %v193
          %v236 = vmul.f32 %v217, %v234
          %v237 = vmul.f32 %v235, %v236
          %v238 = vmul.f32 %v237, %v237
          %v239 = vsel %vm202, %v238, 0.0
          %v240 = vsel %vm198, %v239, 0.0
          %v241 = vsel %vm187, %v240, 0.0
          %242 = vadd.xlane.f32.xlu0 %v241
          %v243 = vpop.xlane.xlu0 %242
          %v244 = vrot.slane %v243, 4
          %v245 = vadd.f32 %v243, %v244
          %v246 = vrot.slane %v245, 2
          %v247 = vadd.f32 %v245, %v246
          %v248 = vrot.slane %v247, 1
          %v249 = vadd.f32 %v247, %v248
          %s250 = vtos %v249
          %v251 = vsel %vm187, %v239, 0.0
          %252 = vadd.xlane.f32.xlu0 %v251
          %v253 = vpop.xlane.xlu0 %252
          %v254 = vrot.slane %v253, 4
          %v255 = vadd.f32 %v253, %v254
          %v256 = vrot.slane %v255, 2
          %v257 = vadd.f32 %v255, %v256
          %v258 = vrot.slane %v257, 1
          %v259 = vadd.f32 %v257, %v258
          %s260 = vtos %v259
          %s261 = scvt.s32.f32 %s192
          %s262 = ssub.f32 %s261, %s250
          %s263 = ssub.f32 %s260, %s250
          %s264 = smul.f32 %s263, 0.5
          %s265 = smul.f32 %s262, 0.5
          %v266 = vstv %s261
          %v267 = vrcp.pop %v266
          %v268 = vmul.f32 %v266, %v267
          %v269 = vsub.f32 1.0, %v268
          %v270 = vmul.f32 %v267, %v269
          %v271 = vadd.f32 %v267, %v270
          %vm272 = vweird.f32 %v266
          %vm273 = vweird.f32 %v267
          %vm274 = vmor %vm272, %vm273
          %v275 = vsel %vm274, %v267, %v271
          %v276 = vand.u32 2147483647, %v266
          %vm277 = vcmp.eq.f32.partialorder %v276, 8.507059e+37
          %v278 = vand.u32 %v266, 2147483648
          %v279 = vor.u32 1.1754944e-38, %v278
          %v280 = vsel %vm277, %v279, %v275
          %s281 = vtos %v280
          %s282 = smul.f32 %s265, %s281
          %s283 = ssub.f32 %s261, 1.0
          %s284 = smul.f32 %s261, %s283
          %v285 = vstv %s284
          %v286 = vrcp.pop %v285
          %v287 = vmul.f32 %v285, %v286
          %v288 = vsub.f32 1.0, %v287
          %v289 = vmul.f32 %v286, %v288
          %v290 = vadd.f32 %v286, %v289
          %vm291 = vweird.f32 %v285
          %vm292 = vweird.f32 %v286
          %vm293 = vmor %vm291, %vm292
          %v294 = vsel %vm293, %v286, %v290
          %v295 = vand.u32 2147483647, %v285
          %vm296 = vcmp.eq.f32.partialorder %v295, 8.507059e+37
          %v297 = vand.u32 %v285, 2147483648
          %v298 = vor.u32 1.1754944e-38, %v297
          %v299 = vsel %vm296, %v298, %v294
          %s300 = vtos %v299
          %s301 = smul.f32 %s300, %s264
          %s302 = sadd.f32 %s282, %s301
          %v303 = vstv %s302
          %304 = vst [vmem:[%s157] sm:$0xff] %v303
        $region36: #{tpu_custom_call.1} parent=23 // pred_fallthru
          _
        %s305 = sand.u32 %s75, 1
        %s306 = scalar_lea.sflag [#allocation7], %s305
        %s307 = sand.u32 %s75, 1
        %s308 = smul.addr %s307, 8
        %s309 = scalar_lea.vmem [#allocation8], %s308
        // Predicated region
        $region37: #{tpu_custom_call.1} parent=23 // pred_check
          %p310 = pneg %p85
        $region38: #{tpu_custom_call.1} parent=23 // pred_check_branch
          %312 = sbr.rel (%p310) target = $region40
        $region39: #{tpu_custom_call.1} parent=23 // pred_region
          %314 = vsyncadd %s306, 0
          %s315 = smul.addr %s31, 8
          %s316 = scalar_lea.hbm %s2, %s315
          %s318 = sshll.u32 %s309, 4
          %s319 = int_to_ptr.vmem [resolvable:$true] %s318
          %s320 = sshll.u32 %s316, 4
          %s321 = int_to_ptr.hbm [resolvable:$true] %s320
          %323 = dma.vmem_to_hbm [thread:$0]  %s319, 128, %s321, %s306
        $region40: #{tpu_custom_call.1} parent=23 // pred_fallthru
          _
      $region24: #{tpu_custom_call.1} parent=5 // pred_fallthru
        _
      %p324 = scmp.le.s32.totalorder 2, %s22
      // Predicated region
      $region41: #{tpu_custom_call.1} parent=5 // pred_check
        %p325 = pneg %p324
      $region42: #{tpu_custom_call.1} parent=5 // pred_check_branch
        %327 = sbr.rel (%p325) target = $region44
      $region43: #{tpu_custom_call.1} parent=5 // pred_region
        %s328 = ssub.s32 %s22, 2
        // Predicated region
        $region45: #{tpu_custom_call.1} parent=43 // pred_check
          %p329 = pneg %p91
        $region46: #{tpu_custom_call.1} parent=43 // pred_check_branch
          %331 = sbr.rel (%p329) target = $region48
        $region47: #{tpu_custom_call.1} parent=43 // pred_region
          %s332 = sand.u32 %s76, 1
          %s333 = scalar_lea.sflag [#allocation7], %s332
          %s334 = sand.u32 %s76, 1
          %s335 = smul.addr %s334, 8
          %s336 = scalar_lea.vmem [#allocation8], %s335
          %338 = dma.done %s333, 128
        $region48: #{tpu_custom_call.1} parent=43 // pred_fallthru
          _
      $region44: #{tpu_custom_call.1} parent=5 // pred_fallthru
        _
    $region6: #{tpu_custom_call.1} parent=1 // loop_footer
      %s26 = sadd.s32 1, %s22
    $region7: #{tpu_custom_call.1} parent=1 // loop_footer_branch
      %21 = sbr.rel target = $region3
    $region8: #{tpu_custom_call.1} parent=1 // loop_exit
      _
    %339 = vsyncpa [#allocation6], 1
    %s340 = scalar_lea.sflag [#allocation6], 1
    %341 = vsyncpa %s340, 1
    %342 = vsyncpa [#allocation7], 1
    %s343 = scalar_lea.sflag [#allocation7], 1
    %344 = vsyncpa %s343, 1

</llo_original>
